<compile_context>
chip_gen: v6e
topology: v6e:2x2x1
jax: 0.10.0
libtpu: 0.0.40
codegen_flags: <defaults>
</compile_context>

<pallas_src>
import functools
import math

import jax
import jax.numpy as jnp
from jax.experimental import pallas as pl
from jax.experimental.pallas import tpu as pltpu


def _round_up(a, m):
    return -(-a // m) * m


def _sinusoidal_pos_emb_kernel(selfreq_ref, phase_ref, x_ref, o_ref, *,
                               g, tb, x_resident):
    # selfreq_ref: (g, width) f32, VMEM-resident.  Row k holds the frequency
    #              table for packed-row k's columns and 0 elsewhere, so the
    #              per-row selection and the freq multiply are one table.
    # phase_ref:   (1, width) f32, VMEM-resident.  0 on sin columns, pi/2 on cos.
    # x_ref:       positions; (rows_p, g) resident or (tb, g) per-block.
    # o_ref:       (tb, width) output block.
    if x_resident:
        row0 = pl.multiple_of(pl.program_id(0) * tb, tb)
        x = x_ref[pl.ds(row0, tb), :]            # (tb, g) slice of resident x
    else:
        x = x_ref[...]                           # (tb, g)

    # emb = x_wide * FREQ + PHASE, built as a short unrolled sum of full-width
    # (128-lane-dense) broadcast multiply-adds.  g == 1 whenever dim % 128 == 0.
    emb = x[:, 0:1] * selfreq_ref[0:1, :]        # (tb, width)
    for k in range(1, g):
        emb = emb + x[:, k:k + 1] * selfreq_ref[k:k + 1, :]
    emb = emb + phase_ref[...]

    # One full-width transcendental + one unmasked full-width store per block.
    o_ref[...] = jnp.sin(emb).astype(o_ref.dtype)


def sinusoidal_pos_emb(x, dim, out_dtype=jnp.float32, max_block_rows=None):
    """x: (B,) positions. Returns (B, dim) sinusoidal embedding (out_dtype)."""
    assert dim % 2 == 0 and dim >= 4, "dim must be even and >= 4"
    B = x.shape[0]
    half = dim // 2
    itemsize = jnp.dtype(out_dtype).itemsize
    sub = {4: 8, 2: 16, 1: 32}.get(itemsize, 8)       # sublane tile minimum

    # --- lane packing factor: width = g*dim is a multiple of 128 lanes -------
    g = math.lcm(dim, 128) // dim
    if g > 16:
        # TODO(synk): for odd dims (e.g. 10) pad width to a 128 multiple and
        # slice in the wrapper; here they fall back to an unpacked (lane-sparse
        # but still correct) output block.
        g = 1
    width = g * dim

    rows = -(-B // g)                                  # logical packed rows
    rows_rounded = _round_up(rows, sub)

    # --- row tile: ~4 MiB output blocks, >= 2 grid steps when possible -------
    bytes_per_row = width * itemsize
    budget_rows = max(sub, ((4 << 20) // max(1, bytes_per_row)) // sub * sub)
    tb = min(rows_rounded, budget_rows)
    if max_block_rows is not None:
        tb = min(tb, _round_up(max_block_rows, sub))
    if rows_rounded >= 2 * sub:                        # let v7x's 2 TCs both work
        tb = min(tb, _round_up(-(-rows_rounded // 2), sub))
    tb = max(tb, sub)
    rows_p = _round_up(rows, tb)

    # --- resident tables: selection-folded frequencies + sin/cos phase -------
    freqs = jnp.exp(jnp.arange(half, dtype=jnp.float32)
                    * jnp.float32(-math.log(10000.0) / (half - 1)))
    freq_row = jnp.concatenate([freqs, freqs])                        # (dim,)
    selfreq = (jnp.eye(g, dtype=jnp.float32)[:, :, None]
               * freq_row[None, None, :]).reshape(g, width)           # (g, width)
    phase = jnp.tile(
        jnp.concatenate([jnp.zeros((half,), jnp.float32),
                         jnp.full((half,), math.pi / 2, jnp.float32)]),
        (g,)).reshape(1, width)                                       # (1, width)

    # --- positions: padded, packed, and (when tiny) fully VMEM-resident ------
    x_pad = jnp.zeros((rows_p * g,), jnp.float32).at[:B].set(x.astype(jnp.float32))
    x2d = x_pad.reshape(rows_p, g)
    x_resident = rows_p * g * 4 <= (2 << 20)
    x_spec = (pl.BlockSpec((rows_p, g), lambda i: (0, 0)) if x_resident
              else pl.BlockSpec((tb, g), lambda i: (i, 0)))

    out = pl.pallas_call(
        functools.partial(_sinusoidal_pos_emb_kernel,
                          g=g, tb=tb, x_resident=x_resident),
        out_shape=jax.ShapeDtypeStruct((rows_p, width), out_dtype),
        grid=(rows_p // tb,),
        in_specs=[pl.BlockSpec((g, width), lambda i: (0, 0)),   # selfreq (resident)
                  pl.BlockSpec((1, width), lambda i: (0, 0)),   # phase   (resident)
                  x_spec],
        out_specs=pl.BlockSpec((tb, width), lambda i: (i, 0)),
        compiler_params=pltpu.CompilerParams(
            dimension_semantics=("parallel",)),
    )(selfreq, phase, x2d)

    # (rows_p, g*dim) row-major is a free view of (rows_p*g, dim); drop padding.
    return out.reshape(rows_p * g, dim)[:B]


def _reference(x, dim):
    half = dim // 2
    emb = math.log(10000.0) / (half - 1)
    emb = jnp.exp(jnp.arange(half, dtype=jnp.float32) * -emb)
    emb = x.astype(jnp.float32)[:, None] * emb[None, :]
    return jnp.concatenate([jnp.sin(emb), jnp.cos(emb)], axis=-1)


if __name__ == "__main__":
    key = jax.random.PRNGKey(0)
    B, dim = 8, 32  # small shapes: batch of 8 timesteps, embedding dim 32
    x = jax.random.uniform(key, (B,), jnp.float32, 0.0, 1000.0)

    out = jax.block_until_ready(sinusoidal_pos_emb(x, dim))
    ref = _reference(x, dim)
    assert out.shape == (B, dim)
    assert jnp.allclose(out, ref, atol=2e-4, rtol=1e-4), float(jnp.abs(out - ref).max())

    # Lane-dense dim (>=128) with a non-tile-multiple batch -> 2 grid steps.
    B2, dim2 = 20, 128
    x2 = jax.random.uniform(jax.random.PRNGKey(1), (B2,), jnp.float32, 0.0, 1000.0)
    out2 = jax.block_until_ready(sinusoidal_pos_emb(x2, dim2))
    assert out2.shape == (B2, dim2)
    assert jnp.allclose(out2, _reference(x2, dim2), atol=2e-4, rtol=1e-4)

    print("KERNEL_OK")
</pallas_src>

<mosaic_0001>
module attributes {stable_mosaic.version = 11 : i64} {
  func.func @_sinusoidal_pos_emb_kernel(%arg0: i32, %arg1: memref<4x128xf32, #tpu.memory_space<vmem>>, %arg2: memref<1x128xf32, #tpu.memory_space<vmem>>, %arg3: memref<8x4xf32, #tpu.memory_space<vmem>>, %arg4: memref<8x128xf32, #tpu.memory_space<vmem>>) attributes {dimension_semantics = [#tpu.dimension_semantics<parallel>], iteration_bounds = array<i64: 1>, scalar_prefetch = 0 : i64, scratch_operands = 0 : i64, tpu.core_type = #tpu.core_type<tc>, window_params = [{pipeline_mode = #tpu.pipeline_mode<synchronous>, transform_indices = @transform_0, window_bounds = array<i64: 4, 128>}, {pipeline_mode = #tpu.pipeline_mode<synchronous>, transform_indices = @transform_1, window_bounds = array<i64: 1, 128>}, {pipeline_mode = #tpu.pipeline_mode<synchronous>, transform_indices = @transform_2, window_bounds = array<i64: 8, 4>}, {transform_indices = @transform_3, window_bounds = array<i64: 8, 128>}]} {
    %c8_i32 = arith.constant 8 : i32
    %0 = arith.muli %arg0, %c8_i32 : i32
    %1 = tpu.assume_multiple %0, 8 : i32
    %2 = arith.index_cast %1 : i32 to index
    %c0 = arith.constant 0 : index
    %3 = vector.load %arg3[%2, %c0] : memref<8x4xf32, #tpu.memory_space<vmem>>, vector<8x4xf32>
    %4 = vector.extract_strided_slice %3 {offsets = [0, 0], sizes = [8, 1], strides = [1, 1]} : vector<8x4xf32> to vector<8x1xf32>
    %c0_0 = arith.constant 0 : index
    %c0_1 = arith.constant 0 : index
    %5 = vector.load %arg1[%c0_0, %c0_1] : memref<4x128xf32, #tpu.memory_space<vmem>>, vector<1x128xf32>
    %6 = vector.broadcast %4 : vector<8x1xf32> to vector<8x128xf32>
    %7 = vector.broadcast %5 : vector<1x128xf32> to vector<8x128xf32>
    %8 = arith.mulf %6, %7 : vector<8x128xf32>
    %9 = vector.extract_strided_slice %3 {offsets = [0, 1], sizes = [8, 1], strides = [1, 1]} : vector<8x4xf32> to vector<8x1xf32>
    %c1 = arith.constant 1 : index
    %c0_2 = arith.constant 0 : index
    %10 = vector.load %arg1[%c1, %c0_2] : memref<4x128xf32, #tpu.memory_space<vmem>>, vector<1x128xf32>
    %11 = vector.broadcast %9 : vector<8x1xf32> to vector<8x128xf32>
    %12 = vector.broadcast %10 : vector<1x128xf32> to vector<8x128xf32>
    %13 = arith.mulf %11, %12 : vector<8x128xf32>
    %14 = arith.addf %8, %13 : vector<8x128xf32>
    %15 = vector.extract_strided_slice %3 {offsets = [0, 2], sizes = [8, 1], strides = [1, 1]} : vector<8x4xf32> to vector<8x1xf32>
    %c2 = arith.constant 2 : index
    %c0_3 = arith.constant 0 : index
    %16 = vector.load %arg1[%c2, %c0_3] : memref<4x128xf32, #tpu.memory_space<vmem>>, vector<1x128xf32>
    %17 = vector.broadcast %15 : vector<8x1xf32> to vector<8x128xf32>
    %18 = vector.broadcast %16 : vector<1x128xf32> to vector<8x128xf32>
    %19 = arith.mulf %17, %18 : vector<8x128xf32>
    %20 = arith.addf %14, %19 : vector<8x128xf32>
    %21 = vector.extract_strided_slice %3 {offsets = [0, 3], sizes = [8, 1], strides = [1, 1]} : vector<8x4xf32> to vector<8x1xf32>
    %c3 = arith.constant 3 : index
    %c0_4 = arith.constant 0 : index
    %22 = vector.load %arg1[%c3, %c0_4] : memref<4x128xf32, #tpu.memory_space<vmem>>, vector<1x128xf32>
    %23 = vector.broadcast %21 : vector<8x1xf32> to vector<8x128xf32>
    %24 = vector.broadcast %22 : vector<1x128xf32> to vector<8x128xf32>
    %25 = arith.mulf %23, %24 : vector<8x128xf32>
    %26 = arith.addf %20, %25 : vector<8x128xf32>
    %c0_5 = arith.constant 0 : index
    %c0_6 = arith.constant 0 : index
    %27 = vector.load %arg2[%c0_5, %c0_6] : memref<1x128xf32, #tpu.memory_space<vmem>>, vector<1x128xf32>
    %28 = vector.broadcast %27 : vector<1x128xf32> to vector<8x128xf32>
    %29 = arith.addf %26, %28 : vector<8x128xf32>
    %30 = math.sin %29 : vector<8x128xf32>
    %c0_7 = arith.constant 0 : index
    %c0_8 = arith.constant 0 : index
    %31 = vector.load %arg4[%c0_7, %c0_8] : memref<8x128xf32, #tpu.memory_space<vmem>>, vector<8x128xf32>
    tpu.vector_store %arg4[%c0_7, %c0_8], %30 {strides = array<i32>} : memref<8x128xf32, #tpu.memory_space<vmem>>, vector<8x128xf32>,
    return
  }
  func.func @transform_0(%arg0: i32) -> (i32, i32) {
    %c0_i32 = arith.constant 0 : i32
    %c0_i32_0 = arith.constant 0 : i32
    %c0_i32_1 = arith.constant 0 : i32
    return %c0_i32, %c0_i32_0 : i32, i32
  }
  func.func @transform_1(%arg0: i32) -> (i32, i32) {
    %c0_i32 = arith.constant 0 : i32
    %c0_i32_0 = arith.constant 0 : i32
    %c0_i32_1 = arith.constant 0 : i32
    return %c0_i32, %c0_i32_0 : i32, i32
  }
  func.func @transform_2(%arg0: i32) -> (i32, i32) {
    %c0_i32 = arith.constant 0 : i32
    %c0_i32_0 = arith.constant 0 : i32
    %c0_i32_1 = arith.constant 0 : i32
    return %c0_i32, %c0_i32_0 : i32, i32
  }
  func.func @transform_3(%arg0: i32) -> (i32, i32) {
    %c0_i32 = arith.constant 0 : i32
    %c0_i32_0 = arith.constant 0 : i32
    return %arg0, %c0_i32 : i32, i32
  }
}

</mosaic_0001>

<llo_original>
// kernel: tpu_custom_call.1
$region0: #{tpu_custom_call.1}
  #allocation0 [shape = 'u32[]', space=smem, size = 0x4, offset = 0x4, fixed_abs, tag = 'smem constant byte address 0x4 - core index']
  #allocation1 [shape = 'u32[144,128]{1,0:T(1,128)}', space=vmem, size = 0x12000, scoped, tag = 'internal scratch']
  %s0 = inlined_call_operand.vmem [shape: f32[4,128], index: 0, kind: input, shape index: {}]
  %s1 = inlined_call_operand.vmem [shape: f32[1,128], index: 1, kind: input, shape index: {}]
  %s2 = inlined_call_operand.vmem [shape: f32[8,4], index: 2, kind: input, shape index: {}]
  %s3 = inlined_call_operand.hbm [shape: f32[8,128], index: 3, kind: output, shape index: {}]
  %s4 = sld [smem:[#allocation0]]
  $region22: #{tpu_custom_call.1} parent=0
    _
  %s6 = ssub.s32 1, %s4
  %s7 = scalar_select 0, %s6, %s4
  $region1: #{tpu_custom_call.1} parent=0
    #allocation2 [shape = 'u8[4096]{0}', space=vmem, size = 0x1000, scoped, tag = 'output window, operand 0, single buffered']
    #allocation3 [shape = 's32[1]{0}', space=sflag, size = 0x4, scoped, tag = 'scoped memory for tpu_custom_call.1']
    %8 = vsyncpa [#allocation3], 0
    // Predicated region
    $region2: #{tpu_custom_call.1} parent=1 // pred_check
      _
    $region3: #{tpu_custom_call.1} parent=1 // pred_check_branch
      %10 = sbr.rel (0) target = $region5
    $region4: #{tpu_custom_call.1} parent=1 // pred_region
      _
    $region5: #{tpu_custom_call.1} parent=1 // pred_fallthru
      _
    // Predicated region
    $region6: #{tpu_custom_call.1} parent=1 // pred_check
      _
    $region7: #{tpu_custom_call.1} parent=1 // pred_check_branch
      %12 = sbr.rel (0) target = $region9
    $region8: #{tpu_custom_call.1} parent=1 // pred_region
      _
    $region9: #{tpu_custom_call.1} parent=1 // pred_fallthru
      _
    // Predicated region
    $region10: #{tpu_custom_call.1} parent=1 // pred_check
      _
    $region11: #{tpu_custom_call.1} parent=1 // pred_check_branch
      %14 = sbr.rel (0) target = $region13
    $region12: #{tpu_custom_call.1} parent=1 // pred_region
      _
    $region13: #{tpu_custom_call.1} parent=1 // pred_fallthru
      _
    %s15 = smul.u32 0, 8
    %s16 = scalar_lea.vmem %s2, %s15
    %v17 = vld [vmem:[%s16] sm:$0xff]
    %v18 = vld [vmem:[%s0] sm:$0x1]
    %20 = vset.pattern.permute.xlu0 0
    %21 = vperm.xlu0 %20, %v17
    %v22 = vpop.permute.xlu0 %21
    %v24 = vlaneseq
    %v25 = vshrl.u32 %v24, 7
    %v26 = vsub.s32 0, %v25
    %v27 = vrot.slane %v18, %v26
    %v28 = vmul.f32 %v22, %v27
    %v29 = vld [vmem:[%s0 + $0x1] sm:$0x1]
    %30 = vset.pattern.permute.xlu0 1
    %31 = vperm.xlu0 %30, %v17
    %v32 = vpop.permute.xlu0 %31
    %v34 = vlaneseq
    %v35 = vshrl.u32 %v34, 7
    %v36 = vsub.s32 0, %v35
    %v37 = vrot.slane %v29, %v36
    %v38 = vmul.f32 %v32, %v37
    %v39 = vadd.f32 %v28, %v38
    %v40 = vld [vmem:[%s0 + $0x2] sm:$0x1]
    %41 = vset.pattern.permute.xlu0 2
    %42 = vperm.xlu0 %41, %v17
    %v43 = vpop.permute.xlu0 %42
    %v45 = vlaneseq
    %v46 = vshrl.u32 %v45, 7
    %v47 = vsub.s32 0, %v46
    %v48 = vrot.slane %v40, %v47
    %v49 = vmul.f32 %v43, %v48
    %v50 = vadd.f32 %v39, %v49
    %v51 = vld [vmem:[%s0 + $0x3] sm:$0x1]
    %52 = vset.pattern.permute.xlu0 3
    %53 = vperm.xlu0 %52, %v17
    %v54 = vpop.permute.xlu0 %53
    %v56 = vlaneseq
    %v57 = vshrl.u32 %v56, 7
    %v58 = vsub.s32 0, %v57
    %v59 = vrot.slane %v51, %v58
    %v60 = vmul.f32 %v54, %v59
    %v61 = vadd.f32 %v50, %v60
    %v62 = vld [vmem:[%s1] sm:$0x1]
    %v64 = vlaneseq
    %v65 = vshrl.u32 %v64, 7
    %v66 = vsub.s32 0, %v65
    %v67 = vrot.slane %v62, %v66
    %v69 = vadd.f32 %v61, %v67
    %v70 = vand.u32 2147483647, %v69
    %vm71 = vcmp.le.f32.partialorder %v70, 0.7853982
    %vm72 = vcmp.lt.s32.totalorder %v69, 0
    %v73 = vand.u32 %v69, 2139095040
    %v74 = vshrl.u32 %v73, 23
    %v75 = vsub.s32 %v74, 127
    %v76 = vand.u32 2147483647, %v69
    %v77 = vand.u32 %v76, 8388607
    %v78 = vor.u32 %v77, 8388608
    %v79 = vsub.s32 0, %v78
    %v80 = vadd.s32 %v75, 1
    %vm81 = vcmp.gt.s32.totalorder %v80, 0
    %v82 = vsel %vm81, %v80, 0
    %v83 = vshrl.u32 %v82, 5
    %v84 = vand.u32 %v82, 31
    %v85 = vsub.s32 32, %v84
    %v86 = vshrl.u32 683565275, %v85
    %v87 = vshll.u32 683565275, %v84
    %v88 = vshrl.u32 2475754826, %v85
    %v89 = vor.u32 %v87, %v88
    %v90 = vshll.u32 2475754826, %v84
    %v91 = vshrl.u32 2131351028, %v85
    %v92 = vor.u32 %v90, %v91
    %v93 = vshll.u32 2131351028, %v84
    %v94 = vshrl.u32 2102212464, %v85
    %v95 = vor.u32 %v93, %v94
    %v96 = vshll.u32 2102212464, %v84
    %v97 = vshrl.u32 920167782, %v85
    %v98 = vor.u32 %v96, %v97
    %v99 = vshll.u32 920167782, %v84
    %v100 = vshrl.u32 1326507024, %v85
    %v101 = vor.u32 %v99, %v100
    %vm102 = vcmp.lt.s32.totalorder %v83, 1
    %vm103 = vcmp.lt.s32.totalorder %v83, 2
    %vm104 = vcmp.lt.s32.totalorder %v83, 3
    %vm105 = vcmp.lt.s32.totalorder %v83, 4
    %v106 = vsel %vm102, %v86, %v89
    %v107 = vsel %vm105, %v95, 2102212464
    %v108 = vsel %vm104, %v92, %v107
    %v109 = vsel %vm103, %v106, %v108
    %v110 = vsel %vm102, %v89, %v92
    %v111 = vsel %vm105, %v98, 920167782
    %v112 = vsel %vm104, %v95, %v111
    %v113 = vsel %vm103, %v110, %v112
    %v114 = vsel %vm102, %v92, %v95
    %v115 = vsel %vm105, %v101, 1326507024
    %v116 = vsel %vm104, %v98, %v115
    %v117 = vsel %vm103, %v114, %v116
    %v118 = vshll.u32 %v78, 8
    %v119 = vmul.u32.u64.compose %v118, %v117
    %v120 = vextract.low.u32 %v119
    %v121 = vextract.high.u32 %v119
    %v122 = vmul.u32.u64.compose %v118, %v113
    %v123 = vextract.low.u32 %v122
    %v124 = vextract.high.u32 %v122
    %v125 = vmul.u32 %v118, %v109
    %v126 = vadd.s32 %v121, %v123
    %vm127 = vc.u32 %v121, %v123
    %v128 = vadd.s32 %v124, 1
    %v129 = vsel %vm127, %v128, %v124
    %v130 = vadd.s32 %v125, %v129
    %v131 = vadd.s32 %v130, 536870912
    %v132 = vshrl.u32 %v131, 30
    %v133 = vshll.u32 %v132, 30
    %v134 = vsub.s32 %v130, %v133
    %vm135 = vcmp.lt.s32.totalorder %v134, 0
    %v136 = vsub.s32 0, %v134
    %v137 = vsel %vm135, %v136, %v134
    %v138 = vclz %v137
    %v139 = vsub.s32 %v138, 2
    %vm140 = vcmp.gt.s32.totalorder 0, %v139
    %v141 = vsel %vm140, 0, %v139
    %v142 = vsub.s32 32, %v141
    %v143 = vshll.u32 %v134, %v141
    %v144 = vshrl.u32 %v126, %v142
    %v145 = vor.u32 %v143, %v144
    %v146 = vsub.s32 4294967266, %v141
    %v147 = vadd.s32 %v146, 127
    %v148 = vshll.u32 %v147, 23
    %v149 = vor.u32 4788187, %v148
    %v150 = vand.u32 2147483647, %v149
    %v152 = vcvt.s32.f32 %v145
    %v153 = vmul.f32 %v152, %v150
    %v154 = vxor.u32 %v153, 2147483648
    %v155 = vsel %vm72, %v154, %v153
    %v156 = vsub.s32 4, %v132
    %v157 = vsel %vm72, %v156, %v132
    %v158 = vsel %vm71, %v69, %v155
    %v159 = vsel %vm71, 0, %v157
    %v160 = vcosq.f32.pop %v158
    %v161 = vsinq.f32.pop %v158
    %vm162 = vweird.f32 %v69
    %v163 = vadd.s32 %v159, 3
    %v164 = vand.u32 %v163, 3
    %vm165 = vcmp.lt.s32.totalorder %v164, 2
    %vm166 = vcmp.eq.s32.totalorder %v164, 0
    %v167 = vxor.u32 %v161, 2147483648
    %v168 = vsel %vm166, %v160, %v167
    %vm169 = vcmp.eq.s32.totalorder %v164, 2
    %v170 = vxor.u32 %v160, 2147483648
    %v171 = vsel %vm169, %v170, %v161
    %v172 = vsel %vm165, %v168, %v171
    %v173 = vsel %vm162, nan, %v172
    %174 = vst [vmem:[#allocation2] sm:$0xff] %v173
    // Predicated region
    $region14: #{tpu_custom_call.1} parent=1 // pred_check
      _
    $region15: #{tpu_custom_call.1} parent=1 // pred_check_branch
      %176 = sbr.rel (0) target = $region17
    $region16: #{tpu_custom_call.1} parent=1 // pred_region
      %s178 = ssub.s32 128, 128
      %179 = vsyncadd [#allocation3], %s178
      %s181 = sshll.u32 [#allocation2], 4
      %s182 = int_to_ptr.vmem [resolvable:$true] %s181
      %184 = dma.vmem_to_hbm [thread:$0]  %s182, 128, %s3, [#allocation3]
    $region17: #{tpu_custom_call.1} parent=1 // pred_fallthru
      _
    // Predicated region
    $region18: #{tpu_custom_call.1} parent=1 // pred_check
      _
    $region19: #{tpu_custom_call.1} parent=1 // pred_check_branch
      %186 = sbr.rel (0) target = $region21
    $region20: #{tpu_custom_call.1} parent=1 // pred_region
      %187 = dma.done [#allocation3], 128
    $region21: #{tpu_custom_call.1} parent=1 // pred_fallthru
      _
    %188 = vsyncpa [#allocation3], 1

</llo_original>
